<compile_context>
chip_gen: v5e
topology: v5e:2x2
jax: 0.10.0
libtpu: 0.0.40
codegen_flags: <defaults>
</compile_context>

<pallas_src>
import functools
import math

import jax
import jax.numpy as jnp
from jax import lax
from jax.experimental import pallas as pl
from jax.experimental.pallas import tpu as pltpu


def _round_up(x, m):
    return ((x + m - 1) // m) * m


# ----------------------------------------------------------------------------
# Kernels
# ----------------------------------------------------------------------------
def _prenorm_resident_kernel(x_ref, g_ref, beta_ref, w_ref, b_ref, o_ref, *, eps):
    # 1-D grid over token tiles; full (H, H) weight resident in VMEM.
    # x_ref: (TM, H), g/beta/b: (1, H), w_ref: (H, H), o_ref: (TM, H)
    x = x_ref[...].astype(jnp.float32)

    # LayerNorm (biased variance, matches torch.nn.LayerNorm); gamma folded
    # into the per-row rsqrt scale.
    mean = jnp.mean(x, axis=-1, keepdims=True)
    xc = x - mean
    var = jnp.mean(xc * xc, axis=-1, keepdims=True)
    scale = lax.rsqrt(var + eps) * g_ref[...].astype(jnp.float32)
    y = xc * scale + beta_ref[...].astype(jnp.float32)

    # fn = Linear(H, H): matmul in the weight dtype (bf16 W hits MXU peak),
    # f32 accumulation, bias add in f32.
    out = jnp.dot(y.astype(w_ref.dtype), w_ref[...],
                  preferred_element_type=jnp.float32)
    o_ref[...] = (out + b_ref[...].astype(jnp.float32)).astype(o_ref.dtype)


def _prenorm_tiled_kernel(x_ref, g_ref, beta_ref, w_ref, b_ref, o_ref,
                          y_scratch, *, eps):
    # 2-D grid (token tile i, weight-column tile j); j is "arbitrary".
    # LayerNorm runs once per row tile (at j == 0) and the normalized, cast
    # activations are cached in VMEM scratch for the remaining column tiles.
    j = pl.program_id(1)

    @pl.when(j == 0)
    def _():
        x = x_ref[...].astype(jnp.float32)
        mean = jnp.mean(x, axis=-1, keepdims=True)
        xc = x - mean
        var = jnp.mean(xc * xc, axis=-1, keepdims=True)
        scale = lax.rsqrt(var + eps) * g_ref[...].astype(jnp.float32)
        y = xc * scale + beta_ref[...].astype(jnp.float32)
        y_scratch[...] = y.astype(y_scratch.dtype)

    out = jnp.dot(y_scratch[...], w_ref[...], preferred_element_type=jnp.float32)
    o_ref[...] = (out + b_ref[...].astype(jnp.float32)).astype(o_ref.dtype)


# ----------------------------------------------------------------------------
# Wrapper
# ----------------------------------------------------------------------------
def prenorm_linear(x, gamma, beta, w, b, *, eps=1e-5, tile_m=512, tile_n=512,
                   mxu_dtype=None, force_column_tiling=False):
    """out = Linear(LayerNorm(x; gamma, beta, eps); w, b), fused in one kernel.

    x: (B, S, H);  gamma/beta/b: (H,);  w: (H, H).
    Pass a bf16 `w` (or mxu_dtype=jnp.bfloat16) for the MXU-peak fast path;
    LN statistics / accumulation / bias stay in f32 either way.
    """
    B, S, H = x.shape
    M = B * S
    x2 = x.reshape(M, H)

    if mxu_dtype is None:
        mxu_dtype = w.dtype
    mxu_dtype = jnp.dtype(mxu_dtype)
    w_mxu = w.astype(mxu_dtype)

    g2 = gamma.reshape(1, H)
    be2 = beta.reshape(1, H)
    b2 = b.reshape(1, H)

    out_isz = jnp.dtype(x.dtype).itemsize
    x_isz = jnp.dtype(x2.dtype).itemsize
    w_isz = mxu_dtype.itemsize

    # --- hardware VMEM budget (fall back to v7x's 64 MiB, the tightest) -----
    vmem_physical = 64 << 20
    try:
        info = pltpu.get_tpu_info()
        vmem_physical = int(getattr(info, "vmem_capacity_bytes", vmem_physical))
    except Exception:
        pass
    budget = int(0.70 * vmem_physical)

    # --- path selection: keep W resident when it comfortably fits VMEM ------
    w_bytes = H * H * w_isz
    resident = (not force_column_tiling) and (w_bytes <= min(16 << 20,
                                                             vmem_physical // 4))

    # --- token (M) tile: big (amortize ~0.35us/step), multiple of 8 ---------
    tm = min(tile_m, _round_up(M, 8))
    tm = max(8, _round_up(tm, 8))

    if resident:
        def est_fn(tm_, tn_):
            return (2 * tm_ * H * x_isz          # x tiles (double-buffered)
                    + 2 * tm_ * H * out_isz      # out tiles
                    + 2 * H * H * w_isz          # resident W (2 bufs, safe)
                    + 4 * tm_ * H * 4            # in-kernel f32 LN intermediates
                    + 6 * H * 4)                 # gamma/beta/bias
        tn = H
    else:
        # weight-column (N) tile: lane-dense multiple of 128 dividing H
        if H % 128 == 0:
            tn = min(_round_up(tile_n, 128), H)
            while H % tn != 0:
                tn -= 128
        else:
            tn = H

        def est_fn(tm_, tn_):
            return (2 * tm_ * H * x_isz
                    + 2 * tm_ * tn_ * out_isz
                    + 2 * H * tn_ * w_isz        # W column tiles (double-buffered)
                    + tm_ * H * w_isz            # cached normalized y (scratch)
                    + 4 * tm_ * H * 4            # in-kernel f32 LN intermediates
                    + 6 * H * 4)

    while est_fn(tm, tn) > budget and tm > 64:
        tm = max(64, _round_up(tm // 2, 8))
    if not resident:
        while est_fn(tm, tn) > budget and tn > 128 and tn % 256 == 0:
            tn //= 2

    est = est_fn(tm, tn)
    # v5e's default scoped VMEM is ~16 MiB -> raise the limit past ~14 MiB,
    # but leave headroom below physical (v7x: cap ~54 MiB, not 64 MiB).
    vmem_limit = None
    if est > (14 << 20):
        vmem_limit = min(int(est * 1.5), int(0.85 * vmem_physical))

    grid_m = pl.cdiv(M, tm)   # no host-side pad; Pallas masks the partial block

    if resident:
        out2 = pl.pallas_call(
            functools.partial(_prenorm_resident_kernel, eps=eps),
            out_shape=jax.ShapeDtypeStruct((M, H), x.dtype),
            grid_spec=pltpu.PrefetchScalarGridSpec(
                num_scalar_prefetch=0,
                grid=(grid_m,),
                in_specs=[
                    pl.BlockSpec((tm, H), lambda i: (i, 0)),   # x token tile
                    pl.BlockSpec((1, H), lambda i: (0, 0)),    # LN gamma
                    pl.BlockSpec((1, H), lambda i: (0, 0)),    # LN beta
                    pl.BlockSpec((H, H), lambda i: (0, 0)),    # resident W
                    pl.BlockSpec((1, H), lambda i: (0, 0)),    # bias
                ],
                out_specs=pl.BlockSpec((tm, H), lambda i: (i, 0)),
            ),
            compiler_params=pltpu.CompilerParams(
                dimension_semantics=("parallel",),
                vmem_limit_bytes=vmem_limit,
            ),
        )(x2, g2, be2, w_mxu, b2)
    else:
        grid_n = H // tn
        out2 = pl.pallas_call(
            functools.partial(_prenorm_tiled_kernel, eps=eps),
            out_shape=jax.ShapeDtypeStruct((M, H), x.dtype),
            grid_spec=pltpu.PrefetchScalarGridSpec(
                num_scalar_prefetch=0,
                grid=(grid_m, grid_n),
                in_specs=[
                    pl.BlockSpec((tm, H), lambda i, j: (i, 0)),   # x token tile
                    pl.BlockSpec((1, H), lambda i, j: (0, 0)),    # LN gamma
                    pl.BlockSpec((1, H), lambda i, j: (0, 0)),    # LN beta
                    pl.BlockSpec((H, tn), lambda i, j: (0, j)),   # W column tile
                    pl.BlockSpec((1, tn), lambda i, j: (0, j)),   # bias tile
                ],
                out_specs=pl.BlockSpec((tm, tn), lambda i, j: (i, j)),
                scratch_shapes=[pltpu.VMEM((tm, H), mxu_dtype)],  # cached y
            ),
            compiler_params=pltpu.CompilerParams(
                # Megacore sharding pinned to the token axis; j carries the
                # cached-y dependency so it must stay "arbitrary".
                dimension_semantics=("parallel", "arbitrary"),
                vmem_limit_bytes=vmem_limit,
            ),
        )(x2, g2, be2, w_mxu, b2)

    return out2.reshape(B, S, H)


def prenorm_linear_ref(x, gamma, beta, w, b, eps=1e-5):
    # Pure-JAX reference of PreNorm(dim, Linear(dim, dim)).forward
    mean = jnp.mean(x, axis=-1, keepdims=True)
    var = jnp.mean((x - mean) ** 2, axis=-1, keepdims=True)
    xn = (x - mean) * lax.rsqrt(var + eps)
    y = xn * gamma + beta
    return jnp.einsum("bsh,hk->bsk", y, w.astype(jnp.float32)) + b


if __name__ == "__main__":
    B, S, H = 2, 8, 32
    key = jax.random.PRNGKey(0)
    kx, kg, kbe, kw, kb = jax.random.split(key, 5)

    x = jax.random.normal(kx, (B, S, H), dtype=jnp.float32)
    # LayerNorm parameters (near identity, deterministic).
    gamma = 1.0 + 0.01 * jax.random.normal(kg, (H,), dtype=jnp.float32)
    beta = 0.01 * jax.random.normal(kbe, (H,), dtype=jnp.float32)
    # Deterministic "Linear(H, H)" parameters for fn.
    w = jax.random.normal(kw, (H, H), dtype=jnp.float32) * (1.0 / math.sqrt(H))
    b = 0.01 * jax.random.normal(kb, (H,), dtype=jnp.float32)

    ref = prenorm_linear_ref(x, gamma, beta, w, b)

    # 1) f32, resident-weight fast path.
    out = jax.block_until_ready(prenorm_linear(x, gamma, beta, w, b))
    assert out.shape == (B, S, H) and out.dtype == x.dtype
    assert jnp.allclose(out, ref, atol=1e-5, rtol=1e-5), "resident path mismatch"

    # 2) bf16-weight MXU fast path (f32 stats/accum), loose tolerance.
    w_bf16 = w.astype(jnp.bfloat16)
    out_bf = jax.block_until_ready(prenorm_linear(x, gamma, beta, w_bf16, b))
    ref_bf = prenorm_linear_ref(x, gamma, beta, w_bf16, b)
    assert jnp.allclose(out_bf, ref_bf, atol=5e-2, rtol=5e-2), "bf16 path mismatch"

    # 3) Column-tiled fallback path (cached-y scratch, "arbitrary" j axis).
    out_t = jax.block_until_ready(
        prenorm_linear(x, gamma, beta, w, b, force_column_tiling=True))
    assert jnp.allclose(out_t, ref, atol=1e-5, rtol=1e-5), "tiled path mismatch"

    # 4) Non-divisible token count (partial last block masked by Pallas,
    #    no host-side pad/slice).
    Sp = 7
    xp = jax.random.normal(kx, (B, Sp, H), dtype=jnp.float32)
    out_p = jax.block_until_ready(prenorm_linear(xp, gamma, beta, w, b))
    ref_p = prenorm_linear_ref(xp, gamma, beta, w, b)
    assert out_p.shape == (B, Sp, H)
    assert jnp.allclose(out_p, ref_p, atol=1e-5, rtol=1e-5), "partial-block mismatch"

    # TODO(synk): `fn` in PreNorm is an arbitrary module; only a Linear(H, H)
    # instantiation is fused here.

    print("KERNEL_OK")
</pallas_src>

<mosaic_0001>
module attributes {stable_mosaic.version = 11 : i64} {
  func.func @_prenorm_resident_kernel(%arg0: i32, %arg1: memref<16x32xf32, #tpu.memory_space<vmem>>, %arg2: memref<1x32xf32, #tpu.memory_space<vmem>>, %arg3: memref<1x32xf32, #tpu.memory_space<vmem>>, %arg4: memref<32x32xf32, #tpu.memory_space<vmem>>, %arg5: memref<1x32xf32, #tpu.memory_space<vmem>>, %arg6: memref<16x32xf32, #tpu.memory_space<vmem>>) attributes {dimension_semantics = [#tpu.dimension_semantics<parallel>], iteration_bounds = array<i64: 1>, scalar_prefetch = 0 : i64, scratch_operands = 0 : i64, tpu.core_type = #tpu.core_type<tc>, window_params = [{transform_indices = @transform_0, window_bounds = array<i64: 16, 32>}, {pipeline_mode = #tpu.pipeline_mode<synchronous>, transform_indices = @transform_1, window_bounds = array<i64: 1, 32>}, {pipeline_mode = #tpu.pipeline_mode<synchronous>, transform_indices = @transform_2, window_bounds = array<i64: 1, 32>}, {pipeline_mode = #tpu.pipeline_mode<synchronous>, transform_indices = @transform_3, window_bounds = array<i64: 32, 32>}, {pipeline_mode = #tpu.pipeline_mode<synchronous>, transform_indices = @transform_4, window_bounds = array<i64: 1, 32>}, {transform_indices = @transform_5, window_bounds = array<i64: 16, 32>}]} {
    %c0 = arith.constant 0 : index
    %c0_0 = arith.constant 0 : index
    %0 = vector.load %arg1[%c0, %c0_0] : memref<16x32xf32, #tpu.memory_space<vmem>>, vector<16x32xf32>
    %cst = arith.constant dense<0.000000e+00> : vector<16xf32>
    %1 = vector.multi_reduction <add>, %0, %cst [1] : vector<16x32xf32> to vector<16xf32>
    %2 = vector.shape_cast %1 : vector<16xf32> to vector<16x1xf32>
    %cst_1 = arith.constant 3.200000e+01 : f32
    %3 = vector.broadcast %cst_1 : f32 to vector<16x1xf32>
    %4 = arith.divf %2, %3 : vector<16x1xf32>
    %5 = vector.broadcast %4 : vector<16x1xf32> to vector<16x32xf32>
    %6 = arith.subf %0, %5 : vector<16x32xf32>
    %7 = arith.mulf %6, %6 : vector<16x32xf32>
    %cst_2 = arith.constant dense<0.000000e+00> : vector<16xf32>
    %8 = vector.multi_reduction <add>, %7, %cst_2 [1] : vector<16x32xf32> to vector<16xf32>
    %9 = vector.shape_cast %8 : vector<16xf32> to vector<16x1xf32>
    %cst_3 = arith.constant 3.200000e+01 : f32
    %10 = vector.broadcast %cst_3 : f32 to vector<16x1xf32>
    %11 = arith.divf %9, %10 : vector<16x1xf32>
    %cst_4 = arith.constant 9.99999974E-6 : f32
    %12 = vector.broadcast %cst_4 : f32 to vector<16x1xf32>
    %13 = arith.addf %11, %12 : vector<16x1xf32>
    %14 = math.rsqrt %13 : vector<16x1xf32>
    %c0_5 = arith.constant 0 : index
    %c0_6 = arith.constant 0 : index
    %15 = vector.load %arg2[%c0_5, %c0_6] : memref<1x32xf32, #tpu.memory_space<vmem>>, vector<1x32xf32>
    %16 = vector.broadcast %14 : vector<16x1xf32> to vector<16x32xf32>
    %17 = vector.broadcast %15 : vector<1x32xf32> to vector<16x32xf32>
    %18 = arith.mulf %16, %17 : vector<16x32xf32>
    %19 = arith.mulf %6, %18 : vector<16x32xf32>
    %c0_7 = arith.constant 0 : index
    %c0_8 = arith.constant 0 : index
    %20 = vector.load %arg3[%c0_7, %c0_8] : memref<1x32xf32, #tpu.memory_space<vmem>>, vector<1x32xf32>
    %21 = vector.broadcast %20 : vector<1x32xf32> to vector<16x32xf32>
    %22 = arith.addf %19, %21 : vector<16x32xf32>
    %c0_9 = arith.constant 0 : index
    %c0_10 = arith.constant 0 : index
    %23 = vector.load %arg4[%c0_9, %c0_10] : memref<32x32xf32, #tpu.memory_space<vmem>>, vector<32x32xf32>
    %cst_11 = arith.constant dense<0.000000e+00> : vector<16x32xf32>
    %24 = tpu.matmul %22, %23, %cst_11 {dimension_numbers = #tpu.dot_dimension_numbers<[1], [0], [0], [1], [0, 0, 1, 1], [], []>} : vector<16x32xf32>, vector<32x32xf32>, vector<16x32xf32> -> vector<16x32xf32>
    %c0_12 = arith.constant 0 : index
    %c0_13 = arith.constant 0 : index
    %25 = vector.load %arg5[%c0_12, %c0_13] : memref<1x32xf32, #tpu.memory_space<vmem>>, vector<1x32xf32>
    %26 = vector.broadcast %25 : vector<1x32xf32> to vector<16x32xf32>
    %27 = arith.addf %24, %26 : vector<16x32xf32>
    %c0_14 = arith.constant 0 : index
    %c0_15 = arith.constant 0 : index
    %28 = vector.load %arg6[%c0_14, %c0_15] : memref<16x32xf32, #tpu.memory_space<vmem>>, vector<16x32xf32>
    tpu.vector_store %arg6[%c0_14, %c0_15], %27 {strides = array<i32>} : memref<16x32xf32, #tpu.memory_space<vmem>>, vector<16x32xf32>,
    return
  }
  func.func @transform_0(%arg0: i32) -> (i32, i32) {
    %c0_i32 = arith.constant 0 : i32
    %c0_i32_0 = arith.constant 0 : i32
    return %arg0, %c0_i32 : i32, i32
  }
  func.func @transform_1(%arg0: i32) -> (i32, i32) {
    %c0_i32 = arith.constant 0 : i32
    %c0_i32_0 = arith.constant 0 : i32
    %c0_i32_1 = arith.constant 0 : i32
    return %c0_i32, %c0_i32_0 : i32, i32
  }
  func.func @transform_2(%arg0: i32) -> (i32, i32) {
    %c0_i32 = arith.constant 0 : i32
    %c0_i32_0 = arith.constant 0 : i32
    %c0_i32_1 = arith.constant 0 : i32
    return %c0_i32, %c0_i32_0 : i32, i32
  }
  func.func @transform_3(%arg0: i32) -> (i32, i32) {
    %c0_i32 = arith.constant 0 : i32
    %c0_i32_0 = arith.constant 0 : i32
    %c0_i32_1 = arith.constant 0 : i32
    return %c0_i32, %c0_i32_0 : i32, i32
  }
  func.func @transform_4(%arg0: i32) -> (i32, i32) {
    %c0_i32 = arith.constant 0 : i32
    %c0_i32_0 = arith.constant 0 : i32
    %c0_i32_1 = arith.constant 0 : i32
    return %c0_i32, %c0_i32_0 : i32, i32
  }
  func.func @transform_5(%arg0: i32) -> (i32, i32) {
    %c0_i32 = arith.constant 0 : i32
    %c0_i32_0 = arith.constant 0 : i32
    return %arg0, %c0_i32 : i32, i32
  }
}

</mosaic_0001>

<llo_original>
// kernel: tpu_custom_call.1
$region0: #{tpu_custom_call.1}
  #allocation0 [shape = 'u32[]', space=smem, size = 0x4, offset = 0x4, fixed_abs, tag = 'smem constant byte address 0x4 - core index']
  #allocation1 [shape = 'u32[72,128]{1,0:T(1,128)}', space=vmem, size = 0x9000, scoped, tag = 'internal scratch']
  %s0 = inlined_call_operand.hbm [shape: f32[16,32], index: 0, kind: input, shape index: {}]
  %s1 = inlined_call_operand.hbm [shape: f32[1,32], index: 1, kind: input, shape index: {}]
  %s2 = inlined_call_operand.vmem [shape: f32[1,32], index: 2, kind: input, shape index: {}]
  %s3 = inlined_call_operand.hbm [shape: f32[32,32], index: 3, kind: input, shape index: {}]
  %s4 = inlined_call_operand.vmem [shape: f32[1,32], index: 4, kind: input, shape index: {}]
  %s5 = inlined_call_operand.hbm [shape: f32[16,32], index: 5, kind: output, shape index: {}]
  %s6 = sld [smem:[#allocation0]]
  $region42: #{tpu_custom_call.1} parent=0
    _
  %s8 = ssub.s32 1, %s6
  %s9 = scalar_select 0, %s8, %s6
  $region1: #{tpu_custom_call.1} parent=0
    #allocation2 [shape = 'u8[8192]{0}', space=vmem, size = 0x2000, scoped, tag = 'input window, operand 0, single buffered']
    #allocation3 [shape = 's32[1]{0}', space=sflag, size = 0x4, scoped, tag = 'scoped memory for tpu_custom_call.1']
    #allocation4 [shape = 's32[1]{0}', space=sflag, size = 0x4, scoped, tag = 'scoped memory for tpu_custom_call.1']
    #allocation5 [shape = 'u8[512]{0}', space=vmem, size = 0x400, scoped, tag = 'input window, operand 1, single buffered']
    #allocation6 [shape = 's32[1]{0}', space=sflag, size = 0x4, scoped, tag = 'scoped memory for tpu_custom_call.1']
    #allocation7 [shape = 'u8[16384]{0}', space=vmem, size = 0x4000, scoped, tag = 'input window, operand 3, single buffered']
    #allocation8 [shape = 'u8[8192]{0}', space=vmem, size = 0x2000, scoped, tag = 'output window, operand 0, single buffered']
    %10 = vsyncpa [#allocation3], 0
    %11 = vsyncpa [#allocation6], 0
    %12 = vsyncpa [#allocation4], 0
    // Predicated region
    $region2: #{tpu_custom_call.1} parent=1 // pred_check
      _
    $region3: #{tpu_custom_call.1} parent=1 // pred_check_branch
      %14 = sbr.rel (0) target = $region5
    $region4: #{tpu_custom_call.1} parent=1 // pred_region
      %16 = vsyncadd [#allocation3], 0
      %s17 = sshll.u32 %s0, 4
      %s18 = int_to_ptr.hbm [resolvable:$true] %s17
      %s19 = sshll.u32 [#allocation2], 4
      %s20 = int_to_ptr.vmem [resolvable:$true] %s19
      %25 = dma.hbm_to_vmem [thread:$0]  %s18, 256, %s20, [#allocation3], 128, 128, 8
    $region5: #{tpu_custom_call.1} parent=1 // pred_fallthru
      _
    // Predicated region
    $region6: #{tpu_custom_call.1} parent=1 // pred_check
      _
    $region7: #{tpu_custom_call.1} parent=1 // pred_check_branch
      %27 = sbr.rel (0) target = $region9
    $region8: #{tpu_custom_call.1} parent=1 // pred_region
      %29 = vsyncadd [#allocation6], 0
      %s31 = sshll.u32 %s1, 4
      %s32 = int_to_ptr.hbm [resolvable:$true] %s31
      %s33 = sshll.u32 [#allocation5], 4
      %s34 = int_to_ptr.vmem [resolvable:$true] %s33
      %36 = dma.hbm_to_vmem [thread:$0]  %s32, 16, %s34, [#allocation6]
    $region9: #{tpu_custom_call.1} parent=1 // pred_fallthru
      _
    // Predicated region
    $region10: #{tpu_custom_call.1} parent=1 // pred_check
      _
    $region11: #{tpu_custom_call.1} parent=1 // pred_check_branch
      %38 = sbr.rel (0) target = $region13
    $region12: #{tpu_custom_call.1} parent=1 // pred_region
      _
    $region13: #{tpu_custom_call.1} parent=1 // pred_fallthru
      _
    // Predicated region
    $region14: #{tpu_custom_call.1} parent=1 // pred_check
      _
    $region15: #{tpu_custom_call.1} parent=1 // pred_check_branch
      %40 = sbr.rel (0) target = $region17
    $region16: #{tpu_custom_call.1} parent=1 // pred_region
      %42 = vsyncadd [#allocation6], 0
      %s43 = sshll.u32 %s3, 4
      %s44 = int_to_ptr.hbm [resolvable:$true] %s43
      %s45 = sshll.u32 [#allocation7], 4
      %s46 = int_to_ptr.vmem [resolvable:$true] %s45
      %51 = dma.hbm_to_vmem [thread:$0]  %s44, 512, %s46, [#allocation6], 128, 128, 8
    $region17: #{tpu_custom_call.1} parent=1 // pred_fallthru
      _
    // Predicated region
    $region18: #{tpu_custom_call.1} parent=1 // pred_check
      _
    $region19: #{tpu_custom_call.1} parent=1 // pred_check_branch
      %53 = sbr.rel (0) target = $region21
    $region20: #{tpu_custom_call.1} parent=1 // pred_region
      _
    $region21: #{tpu_custom_call.1} parent=1 // pred_fallthru
      _
    // Predicated region
    $region22: #{tpu_custom_call.1} parent=1 // pred_check
      _
    $region23: #{tpu_custom_call.1} parent=1 // pred_check_branch
      %55 = sbr.rel (0) target = $region25
    $region24: #{tpu_custom_call.1} parent=1 // pred_region
      %57 = dma.done [#allocation3], 256
    $region25: #{tpu_custom_call.1} parent=1 // pred_fallthru
      _
    // Predicated region
    $region26: #{tpu_custom_call.1} parent=1 // pred_check
      _
    $region27: #{tpu_custom_call.1} parent=1 // pred_check_branch
      %59 = sbr.rel (0) target = $region29
    $region28: #{tpu_custom_call.1} parent=1 // pred_region
      %61 = dma.done [#allocation6], 16
    $region29: #{tpu_custom_call.1} parent=1 // pred_fallthru
      _
    // Predicated region
    $region30: #{tpu_custom_call.1} parent=1 // pred_check
      _
    $region31: #{tpu_custom_call.1} parent=1 // pred_check_branch
      %63 = sbr.rel (0) target = $region33
    $region32: #{tpu_custom_call.1} parent=1 // pred_region
      %65 = dma.done [#allocation6], 512
    $region33: #{tpu_custom_call.1} parent=1 // pred_fallthru
      _
    %v66 = vld [vmem:[#allocation2] sm:$0xff]
    %v67 = vld [vmem:[#allocation2 + $0x8] sm:$0xff]
    %vm68 = vcmask 261120
    %v69 = vsel %vm68, %v66, 0.0
    %70 = vadd.xlane.f32.xlu0 %v69
    %v71 = vpop.xlane.xlu0 %70
    %v72 = vsel %vm68, %v67, 0.0
    %73 = vadd.xlane.f32.xlu0 %v72
    %v74 = vpop.xlane.xlu0 %73
    %v75 = vrcp.pop 32.0
    %v76 = vmul.f32 32.0, %v75
    %v77 = vsub.f32 1.0, %v76
    %v78 = vmul.f32 %v75, %v77
    %v79 = vadd.f32 %v75, %v78
    %vm80 = vweird.f32 %v75
    %v81 = vsel %vm80, %v75, %v79
    %v82 = vmul.f32 %v71, %v81
    %v83 = vmul.f32 %v74, %v81
    %v84 = vsub.f32 %v66, %v82
    %v85 = vsub.f32 %v67, %v83
    %v86 = vmul.f32 %v84, %v84
    %v87 = vmul.f32 %v85, %v85
    %v88 = vsel %vm68, %v86, 0.0
    %89 = vadd.xlane.f32.xlu0 %v88
    %v90 = vpop.xlane.xlu0 %89
    %v91 = vsel %vm68, %v87, 0.0
    %92 = vadd.xlane.f32.xlu0 %v91
    %v93 = vpop.xlane.xlu0 %92
    %v94 = vmul.f32 %v90, %v81
    %v95 = vmul.f32 %v93, %v81
    %v96 = vadd.f32 %v94, 1e-05
    %v97 = vadd.f32 %v95, 1e-05
    %v98 = vrsqrt.pop %v96
    %v99 = vmul.f32 %v98, %v96
    %v100 = vmul.f32 %v99, %v98
    %v101 = vmul.f32 0.5, %v100
    %v102 = vsub.f32 1.5, %v101
    %v103 = vmul.f32 %v98, %v102
    %vm104 = vweird.f32 %v96
    %vm105 = vweird.f32 %v98
    %vm106 = vmor %vm104, %vm105
    %v107 = vsel %vm106, %v98, %v103
    %v108 = vrsqrt.pop %v97
    %v109 = vmul.f32 %v108, %v97
    %v110 = vmul.f32 %v109, %v108
    %v111 = vmul.f32 0.5, %v110
    %v112 = vsub.f32 1.5, %v111
    %v113 = vmul.f32 %v108, %v112
    %vm114 = vweird.f32 %v97
    %vm115 = vweird.f32 %v108
    %vm116 = vmor %vm114, %vm115
    %v117 = vsel %vm116, %v108, %v113
    %v118 = vld [vmem:[#allocation5] sm:$0x1]
    %v120 = vperm.slane %v118, 0
    %v122 = vmul.f32 %v107, %v120
    %v123 = vmul.f32 %v117, %v120
    %v124 = vmul.f32 %v84, %v122
    %v125 = vmul.f32 %v85, %v123
    %v126 = vld [vmem:[%s2] sm:$0x1]
    %v128 = vperm.slane %v126, 0
    %v130 = vadd.f32 %v124, %v128
    %v131 = vadd.f32 %v125, %v128
    %v132 = vld [vmem:[#allocation7] sm:$0xff]
    %v133 = vld [vmem:[#allocation7 + $0x8] sm:$0xff]
    %v134 = vld [vmem:[#allocation7 + $0x10] sm:$0xff]
    %v135 = vld [vmem:[#allocation7 + $0x18] sm:$0xff]
    %v136 = vld [vmem:[%s4] sm:$0x1]
    %v138 = vperm.slane %v136, 0
    %v141 = vsel %vm68, %v130, 0
    %v144 = vsel %vm68, %v131, 0
    %146 = vmatpush.msra.mxu0 0.0
    %147 = vmatpush.msra.mxu0 0.0
    %148 = vmatpush.msra.mxu0 0.0
    %149 = vmatpush.msra.mxu0 0.0
    %150 = vmatpush.msra.mxu0 0.0
    %151 = vmatpush.msra.mxu0 0.0
    %152 = vmatpush.msra.mxu0 0.0
    %153 = vmatpush.msra.mxu0 0.0
    %154 = vmatpush.msra.mxu0 0.0
    %155 = vmatpush.msra.mxu0 0.0
    %156 = vmatpush.msra.mxu0 0.0
    %157 = vmatpush.msra.mxu0 0.0
    %158 = vmatpush.msra.mxu0 %v135
    %159 = vmatpush.msra.mxu0 %v134
    %160 = vmatpush.msra.mxu0 %v133
    %161 = vmatpush.msra.mxu0 %v132
    %162 = vmatmul.f32.gmra.mxu0 %v141
    %v163 = vpop.f32.mrf.mxu0
    %v164 = vadd.f32 %v138, %v163
    %165 = vmatmul.f32.gmra.mxu0 %v144
    %v166 = vpop.f32.mrf.mxu0
    %v167 = vadd.f32 %v138, %v166
    %168 = vdwg.mxu0
    %169 = vst.msk [vmem:[#allocation8] sm:$0xff] %vm68, %v164
    %170 = vst.msk [vmem:[#allocation8 + $0x8] sm:$0xff] %vm68, %v167
    // Predicated region
    $region34: #{tpu_custom_call.1} parent=1 // pred_check
      _
    $region35: #{tpu_custom_call.1} parent=1 // pred_check_branch
      %172 = sbr.rel (0) target = $region37
    $region36: #{tpu_custom_call.1} parent=1 // pred_region
      %174 = vsyncadd [#allocation4], 0
      %s175 = sshll.u32 [#allocation8], 4
      %s176 = int_to_ptr.vmem [resolvable:$true] %s175
      %s177 = sshll.u32 %s5, 4
      %s178 = int_to_ptr.hbm [resolvable:$true] %s177
      %183 = dma.vmem_to_hbm [thread:$0]  %s176, 256, %s178, [#allocation4], 128, 128, 8
    $region37: #{tpu_custom_call.1} parent=1 // pred_fallthru
      _
    // Predicated region
    $region38: #{tpu_custom_call.1} parent=1 // pred_check
      _
    $region39: #{tpu_custom_call.1} parent=1 // pred_check_branch
      %185 = sbr.rel (0) target = $region41
    $region40: #{tpu_custom_call.1} parent=1 // pred_region
      %187 = dma.done [#allocation4], 256
    $region41: #{tpu_custom_call.1} parent=1 // pred_fallthru
      _
    %188 = vsyncpa [#allocation3], 1
    %189 = vsyncpa [#allocation6], 1
    %190 = vsyncpa [#allocation4], 1

</llo_original>
